<compile_context>
chip_gen: v5e
topology: v5e:2x2
jax: 0.10.0
libtpu: 0.0.40
codegen_flags: <defaults>
</compile_context>

<pallas_src>
import functools

import jax
import jax.numpy as jnp
from jax.experimental import pallas as pl
from jax.experimental.pallas import tpu as pltpu


def _transformer_embedding_kernel(ids_ref, tok_tab_ref, pe_ref, *rest,
                                  drop_prob, seq_tile):
    """One grid step: gather TQ embedding rows + add PE (+ dropout)."""
    if drop_prob > 0.0:
        bits_ref, out_ref, gath_ref = rest
    else:
        out_ref, gath_ref = rest

    b = pl.program_id(0)          # batch row
    st = pl.program_id(1)         # sequence tile
    V = tok_tab_ref.shape[0]
    base = st * seq_tile

    # --- gather: one (1, D) dynamic-slice load per token row -----------------
    def gather_row(r, carry):
        tok_id = ids_ref[b, base + r]                 # scalar read from SMEM
        tok_id = jnp.clip(tok_id, 0, V - 1)           # guard OOB ids (no HW check)
        gath_ref[pl.ds(r, 1), :] = tok_tab_ref[pl.ds(tok_id, 1), :]
        return carry

    jax.lax.fori_loop(0, seq_tile, gather_row, 0)

    # --- add positional encoding (vectorized over the whole tile) ------------
    x = gath_ref[...] + pe_ref[...]                   # (TQ, D) f32

    # --- dropout: unsigned compare against threshold, scale folded in --------
    if drop_prob > 0.0:
        thresh = jnp.uint32(min(int(round(drop_prob * (1 << 32))), (1 << 32) - 1))
        keep = bits_ref[0] >= thresh                  # (TQ, D) bool
        x = jnp.where(keep, x * (1.0 / (1.0 - drop_prob)), 0.0)

    out_ref[0] = x


def transformer_embedding(ids, tok_table, pe_table, *, drop_prob,
                          rng_key=None, seq_tile=None):
    """Pallas equivalent of TransformerEmbedding.forward (training-mode dropout)."""
    B, S = ids.shape
    V, D = tok_table.shape
    TQ = S if seq_tile is None else seq_tile
    assert S % TQ == 0, "seq_tile must divide the sequence length"
    n_st = S // TQ

    # Table kept VMEM-resident; for very large vocabularies switch to an
    # HBM (memory_space=pl.ANY) table with per-row make_async_copy gather.
    if V * D * 4 > 48 * (1 << 20):
        raise NotImplementedError(
            "vocab table too large for a VMEM-resident gather; "
            "use the HBM + per-row DMA gather variant")

    pe = pe_table[:S, :].astype(jnp.float32)          # PositionalEncoding slice
    ids = jnp.asarray(ids, jnp.int32)
    tok_table = tok_table.astype(jnp.float32)

    training_dropout = float(drop_prob) > 0.0
    kernel = functools.partial(_transformer_embedding_kernel,
                               drop_prob=float(drop_prob), seq_tile=TQ)

    in_specs = [
        pl.BlockSpec((V, D), lambda b, st, ids_s: (0, 0)),     # emb table (resident)
        pl.BlockSpec((TQ, D), lambda b, st, ids_s: (st, 0)),   # pos enc tile
    ]
    args = [tok_table, pe]
    if training_dropout:
        if rng_key is None:
            rng_key = jax.random.PRNGKey(0)
        # Uniform u32 bits for the keep mask (does not match torch's RNG stream).
        bits = jax.random.bits(rng_key, (B, S, D), dtype=jnp.uint32)
        in_specs.append(pl.BlockSpec((1, TQ, D), lambda b, st, ids_s: (b, st, 0)))
        args.append(bits)

    # VMEM budget: 2x table (worst-case double buffer) + double-buffered blocks
    # + gather scratch, with slack.  Keeps v6e's 32 MiB default from binding.
    blk = TQ * D * 4
    est_vmem = 2 * V * D * 4 + 6 * blk + blk + (1 << 20)
    vmem_limit = int(min(max(est_vmem, 32 * (1 << 20)), 100 * (1 << 20)))

    grid_spec = pltpu.PrefetchScalarGridSpec(
        num_scalar_prefetch=1,                        # token ids land in SMEM
        grid=(B, n_st),
        in_specs=in_specs,
        out_specs=pl.BlockSpec((1, TQ, D), lambda b, st, ids_s: (b, st, 0)),
        scratch_shapes=[pltpu.VMEM((TQ, D), jnp.float32)],
    )
    return pl.pallas_call(
        kernel,
        out_shape=jax.ShapeDtypeStruct((B, S, D), jnp.float32),
        grid_spec=grid_spec,
        compiler_params=pltpu.CompilerParams(
            dimension_semantics=("parallel", "parallel"),
            vmem_limit_bytes=vmem_limit),
    )(ids, *args)


def make_params(vocab_size, d_model, max_len, key):
    """Deterministic synthetic parameters matching the module's __init__."""
    # TokenEmbedding == nn.Embedding(vocab_size, d_model, padding_idx=1):
    # N(0,1) init with the padding row zeroed.
    tok = jax.random.normal(key, (vocab_size, d_model), dtype=jnp.float32)
    tok = tok.at[1].set(0.0)

    # PositionalEncoding buffer (sin on even dims, cos on odd dims).
    pos = jnp.arange(max_len, dtype=jnp.float32)[:, None]
    _2i = jnp.arange(0, d_model, 2, dtype=jnp.float32)
    angle = pos / jnp.power(10000.0, _2i / d_model)
    pe = jnp.zeros((max_len, d_model), dtype=jnp.float32)
    pe = pe.at[:, 0::2].set(jnp.sin(angle))
    pe = pe.at[:, 1::2].set(jnp.cos(angle))
    return tok, pe


if __name__ == "__main__":
    vocab_size, d_model, max_len, drop_prob = 64, 32, 16, 0.1
    B, S = 2, 8

    key = jax.random.PRNGKey(0)
    k_tok, k_ids, k_drop = jax.random.split(key, 3)
    tok_table, pe_table = make_params(vocab_size, d_model, max_len, k_tok)
    ids = jax.random.randint(k_ids, (B, S), 0, vocab_size, dtype=jnp.int32)

    # Module-configured forward (training-mode dropout, p=0.1).
    out = jax.block_until_ready(
        transformer_embedding(ids, tok_table, pe_table,
                              drop_prob=drop_prob, rng_key=k_drop))
    assert out.shape == (B, S, d_model) and out.dtype == jnp.float32
    assert bool(jnp.all(jnp.isfinite(out)))

    # No-dropout path matches the pure-JAX reference exactly.
    out_eval = jax.block_until_ready(
        transformer_embedding(ids, tok_table, pe_table, drop_prob=0.0))
    ref = tok_table[ids] + pe_table[:S][None, :, :]
    assert jnp.allclose(out_eval, ref, atol=1e-6), "mismatch vs reference"

    # Dropout path: surviving elements equal ref / (1 - p).
    keep_mask = out != 0.0
    scaled_ref = ref / (1.0 - drop_prob)
    assert bool(jnp.all(jnp.where(keep_mask,
                                  jnp.abs(out - scaled_ref) < 1e-5, True)))

    print("KERNEL_OK")
</pallas_src>

<mosaic_0001>
module attributes {stable_mosaic.version = 11 : i64} {
  func.func @_transformer_embedding_kernel(%arg0: i32, %arg1: i32, %arg2: memref<2x8xi32, #tpu.memory_space<smem>>, %arg3: memref<64x32xf32, #tpu.memory_space<vmem>>, %arg4: memref<8x32xf32, #tpu.memory_space<vmem>>, %arg5: memref<1x8x32xi32, #tpu.memory_space<vmem>>, %arg6: memref<1x8x32xf32, #tpu.memory_space<vmem>>, %arg7: memref<8x32xf32, #tpu.memory_space<vmem>>) attributes {dimension_semantics = [#tpu.dimension_semantics<parallel>, #tpu.dimension_semantics<parallel>], iteration_bounds = array<i64: 2, 1>, scalar_prefetch = 1 : i64, scratch_operands = 1 : i64, tpu.core_type = #tpu.core_type<tc>, window_params = [{pipeline_mode = #tpu.pipeline_mode<synchronous>, transform_indices = @transform_0, window_bounds = array<i64: 64, 32>}, {transform_indices = @transform_1, window_bounds = array<i64: 8, 32>}, {transform_indices = @transform_2, window_bounds = array<i64: 1, 8, 32>}, {transform_indices = @transform_3, window_bounds = array<i64: 1, 8, 32>}]} {
    %c8_i32 = arith.constant 8 : i32
    %0 = arith.muli %arg1, %c8_i32 : i32
    %c0_i32 = arith.constant 0 : i32
    %c8_i32_0 = arith.constant 8 : i32
    %1 = arith.addi %c0_i32, %c8_i32_0 : i32
    %c1_i32 = arith.constant 1 : i32
    scf.for %arg8 = %c0_i32 to %1 step %c1_i32  : i32 {
      %16 = arith.addi %0, %arg8 : i32
      %17 = arith.index_cast %arg0 : i32 to index
      %18 = arith.index_cast %16 : i32 to index
      %19 = memref.load %arg2[%17, %18] : memref<2x8xi32, #tpu.memory_space<smem>>
      %c0_i32_12 = arith.constant 0 : i32
      %c63_i32 = arith.constant 63 : i32
      %20 = arith.maxsi %c0_i32_12, %19 : i32
      %21 = arith.minsi %c63_i32, %20 : i32
      %22 = arith.index_cast %21 : i32 to index
      %c0_13 = arith.constant 0 : index
      %23 = vector.load %arg3[%22, %c0_13] : memref<64x32xf32, #tpu.memory_space<vmem>>, vector<1x32xf32>
      %24 = arith.index_cast %arg8 : i32 to index
      %c0_14 = arith.constant 0 : index
      %25 = vector.load %arg7[%24, %c0_14] : memref<8x32xf32, #tpu.memory_space<vmem>>, vector<1x32xf32>
      tpu.vector_store %arg7[%24, %c0_14], %23 {strides = array<i32>} : memref<8x32xf32, #tpu.memory_space<vmem>>, vector<1x32xf32>,
    }
    %c8_i32_1 = arith.constant 8 : i32
    %c0 = arith.constant 0 : index
    %c0_2 = arith.constant 0 : index
    %2 = vector.load %arg7[%c0, %c0_2] : memref<8x32xf32, #tpu.memory_space<vmem>>, vector<8x32xf32>
    %c0_3 = arith.constant 0 : index
    %c0_4 = arith.constant 0 : index
    %3 = vector.load %arg4[%c0_3, %c0_4] : memref<8x32xf32, #tpu.memory_space<vmem>>, vector<8x32xf32>
    %4 = arith.addf %2, %3 : vector<8x32xf32>
    %c0_5 = arith.constant 0 : index
    %c0_6 = arith.constant 0 : index
    %c0_7 = arith.constant 0 : index
    %5 = vector.load %arg5[%c0_5, %c0_6, %c0_7] : memref<1x8x32xi32, #tpu.memory_space<vmem>>, vector<1x8x32xi32>
    %6 = vector.shape_cast %5 : vector<1x8x32xi32> to vector<8x32xi32>
    %c429496730_i32 = arith.constant 429496730 : i32
    %7 = vector.broadcast %c429496730_i32 : i32 to vector<8x32xi32>
    %8 = arith.cmpi uge, %6, %7 : vector<8x32xi32>
    %cst = arith.constant 1.11111116 : f32
    %9 = vector.broadcast %cst : f32 to vector<8x32xf32>
    %10 = arith.mulf %4, %9 : vector<8x32xf32>
    %cst_8 = arith.constant 0.000000e+00 : f32
    %11 = vector.broadcast %cst_8 : f32 to vector<8x32xf32>
    %12 = arith.select %8, %10, %11 : vector<8x32xi1>, vector<8x32xf32>
    %c0_9 = arith.constant 0 : index
    %c0_10 = arith.constant 0 : index
    %c0_11 = arith.constant 0 : index
    %13 = vector.load %arg6[%c0_9, %c0_10, %c0_11] : memref<1x8x32xf32, #tpu.memory_space<vmem>>, vector<1x8x32xf32>
    %14 = vector.shape_cast %13 : vector<1x8x32xf32> to vector<8x32xf32>
    %15 = vector.shape_cast %12 : vector<8x32xf32> to vector<1x8x32xf32>
    tpu.vector_store %arg6[%c0_9, %c0_10, %c0_11], %15 {strides = array<i32>} : memref<1x8x32xf32, #tpu.memory_space<vmem>>, vector<1x8x32xf32>,
    return
  }
  func.func @transform_0(%arg0: i32, %arg1: i32, %arg2: memref<2x8xi32, #tpu.memory_space<smem>>) -> (i32, i32) {
    %c0_i32 = arith.constant 0 : i32
    %c0_i32_0 = arith.constant 0 : i32
    %c0_i32_1 = arith.constant 0 : i32
    return %c0_i32, %c0_i32_0 : i32, i32
  }
  func.func @transform_1(%arg0: i32, %arg1: i32, %arg2: memref<2x8xi32, #tpu.memory_space<smem>>) -> (i32, i32) {
    %c0_i32 = arith.constant 0 : i32
    %c0_i32_0 = arith.constant 0 : i32
    return %arg1, %c0_i32 : i32, i32
  }
  func.func @transform_2(%arg0: i32, %arg1: i32, %arg2: memref<2x8xi32, #tpu.memory_space<smem>>) -> (i32, i32, i32) {
    %c0_i32 = arith.constant 0 : i32
    %c0_i32_0 = arith.constant 0 : i32
    return %arg0, %arg1, %c0_i32 : i32, i32, i32
  }
  func.func @transform_3(%arg0: i32, %arg1: i32, %arg2: memref<2x8xi32, #tpu.memory_space<smem>>) -> (i32, i32, i32) {
    %c0_i32 = arith.constant 0 : i32
    %c0_i32_0 = arith.constant 0 : i32
    return %arg0, %arg1, %c0_i32 : i32, i32, i32
  }
}

</mosaic_0001>

<llo_original>
// kernel: tpu_custom_call.1
$region0: #{tpu_custom_call.1}
  #allocation0 [shape = 'u32[]', space=smem, size = 0x4, offset = 0x4, fixed_abs, tag = 'smem constant byte address 0x4 - core index']
  #allocation1 [shape = 'u32[72,128]{1,0:T(1,128)}', space=vmem, size = 0x9000, scoped, tag = 'internal scratch']
  #allocation2 [shape = 'f32[8,32]{1,0:T(8,128)}', space=vmem, size = 0x1000, scoped, tag = 'scratch operand']
  #allocation3 [shape = 's32[1]{0}', space=sflag, size = 0x4, scoped, tag = 'scoped memory for tpu_custom_call.1']
  #allocation4 [shape = 'u8[1024]{0}', space=smem, size = 0x400, scoped, tag = 'prefetched SMEM operand 0']
  %s0 = inlined_call_operand.vmem [shape: s32[2,8], index: 0, kind: input, shape index: {}]
  %s1 = inlined_call_operand.vmem [shape: f32[64,32], index: 1, kind: input, shape index: {}]
  %s2 = inlined_call_operand.vmem [shape: f32[8,32], index: 2, kind: input, shape index: {}]
  %s3 = inlined_call_operand.vmem [shape: u32[2,8,32], index: 3, kind: input, shape index: {}]
  %s4 = inlined_call_operand.hbm [shape: f32[2,8,32], index: 4, kind: output, shape index: {}]
  %s5 = sld [smem:[#allocation0]]
  $region52: #{tpu_custom_call.1} parent=0
    _
  %s7 = ssub.s32 1, %s5
  %s8 = scalar_select 0, %s7, %s5
  %s10 = sshll.u32 %s0, 4
  %s11 = int_to_ptr.vmem [resolvable:$true] %s10
  %13 = dma.vmem_to_smem %s11, 32, [#allocation4], [#allocation3]
  %15 = dma.done [#allocation3], 32
  %16 = sfence
  $region1: #{tpu_custom_call.1} parent=0
    #allocation5 [shape = 'u8[8192]{0}', space=vmem, size = 0x2000, scoped, tag = 'output window, operand 0']
    #allocation6 [shape = 's32[2]{0}', space=sflag, size = 0x8, scoped, tag = 'scoped memory for tpu_custom_call.1']
    %17 = vsyncpa [#allocation6], 0
    %s18 = scalar_lea.sflag [#allocation6], 1
    %19 = vsyncpa %s18, 0
    loop: start=0, step=1, limit=4
    $region2: #{tpu_custom_call.1} parent=1 // loop_pre_header
      _
    $region3: #{tpu_custom_call.1} parent=1 // loop_header
      %s21 = sphi 0, %s25
      %p22 = scmp.ge.s32.totalorder %s21, 4
      %s28 = sphi 0, %s40
      %s29 = sphi 0, %s36
      %s30 = sphi 0, %s28
      %s31 = sphi 0, %s29
      %s32 = sphi 0, %s30
      %s33 = sphi 0, %s31
      %s41 = sphi 0, %s41
      %s43 = sphi 0, %s41
      %s44 = sphi 0, %s43
      %s58 = sphi 0, %s44
      %s64 = sphi 0, %s66
      %s67 = sphi 0, %s64
      %s68 = sphi 0, %s67
      %s84 = sphi 0, %s68
      %s92 = sphi 0, %s94
      %s95 = sphi 0, %s92
      %s96 = sphi 0, %s95
      %s112 = sphi 0, %s96
      %s120 = sphi 0, %s122
      %s123 = sphi 0, %s120
      %s124 = sphi 0, %s123
      %s140 = sphi 0, %s124
    $region4: #{tpu_custom_call.1} parent=1 // loop_header_branch
      %24 = sbr.rel (%p22) target = $region8
    $region5: #{tpu_custom_call.1} parent=1 // loop_body
      %s26 = ssub.s32 %s21, 1
      %s27 = ssub.s32 %s21, 2
      %s34 = sadd.s32 1, %s29
      %p35 = scmp.ge.s32.totalorder %s34, 1
      %s36 = scalar_select %p35, 0, %s34
      %s37 = sadd.s32 1, %s28
      %s38 = scalar_select %p35, %s37, %s28
      %p39 = scmp.ge.s32.totalorder %s38, 2
      %s40 = scalar_select %p39, 0, %s38
      %s42 = sadd.s32 %s41, 1
      %p45 = scmp.eq.s32.totalorder %s21, 1
      %p46 = scmp.ne.s32.totalorder %s41, %s43
      %p47 = scmp.eq.s32.totalorder %s21, 0
      %p48 = por %p46, %p47
      %p49 = scmp.ne.s32.totalorder %s41, %s43
      %p50 = scmp.eq.s32.totalorder %s26, 1
      %p51 = por %p49, %p50
      %p52 = scmp.ne.s32.totalorder %s43, %s44
      %p53 = scmp.eq.s32.totalorder %s26, 0
      %p54 = por %p52, %p53
      %p55 = scmp.ne.s32.totalorder %s43, %s44
      %p56 = scmp.eq.s32.totalorder %s27, 1
      %p57 = por %p55, %p56
      %p59 = scmp.ne.s32.totalorder %s44, %s58
      %p60 = scmp.eq.s32.totalorder %s27, 0
      %p61 = por %p59, %p60
      %s62 = ssub.s32 %s29, %s36
      %p63 = scmp.eq.s32.totalorder %s62, 0
      %s65 = sadd.s32 %s64, 1
      %s66 = scalar_select %p63, %s64, %s65
      %p69 = pneg %p63
      %p70 = scmp.eq.s32.totalorder %s21, 1
      %p71 = por %p69, %p70
      %p72 = scmp.ne.s32.totalorder %s64, %s67
      %p73 = scmp.eq.s32.totalorder %s21, 0
      %p74 = por %p72, %p73
      %p75 = scmp.ne.s32.totalorder %s64, %s67
      %p76 = scmp.eq.s32.totalorder %s26, 1
      %p77 = por %p75, %p76
      %p78 = scmp.ne.s32.totalorder %s67, %s68
      %p79 = scmp.eq.s32.totalorder %s26, 0
      %p80 = por %p78, %p79
      %p81 = scmp.ne.s32.totalorder %s67, %s68
      %p82 = scmp.eq.s32.totalorder %s27, 1
      %p83 = por %p81, %p82
      %p85 = scmp.ne.s32.totalorder %s68, %s84
      %p86 = scmp.eq.s32.totalorder %s27, 0
      %p87 = por %p85, %p86
      %s88 = ssub.s32 %s28, %s40
      %s89 = ssub.s32 %s29, %s36
      %s90 = sor.u32 %s88, %s89
      %p91 = scmp.eq.s32.totalorder %s90, 0
      %s93 = sadd.s32 %s92, 1
      %s94 = scalar_select %p91, %s92, %s93
      %p97 = pneg %p91
      %p98 = scmp.eq.s32.totalorder %s21, 1
      %p99 = por %p97, %p98
      %p100 = scmp.ne.s32.totalorder %s92, %s95
      %p101 = scmp.eq.s32.totalorder %s21, 0
      %p102 = por %p100, %p101
      %p103 = scmp.ne.s32.totalorder %s92, %s95
      %p104 = scmp.eq.s32.totalorder %s26, 1
      %p105 = por %p103, %p104
      %p106 = scmp.ne.s32.totalorder %s95, %s96
      %p107 = scmp.eq.s32.totalorder %s26, 0
      %p108 = por %p106, %p107
      %p109 = scmp.ne.s32.totalorder %s95, %s96
      %p110 = scmp.eq.s32.totalorder %s27, 1
      %p111 = por %p109, %p110
      %p113 = scmp.ne.s32.totalorder %s96, %s112
      %p114 = scmp.eq.s32.totalorder %s27, 0
      %p115 = por %p113, %p114
      %s116 = ssub.s32 %s28, %s40
      %s117 = ssub.s32 %s29, %s36
      %s118 = sor.u32 %s116, %s117
      %p119 = scmp.eq.s32.totalorder %s118, 0
      %s121 = sadd.s32 %s120, 1
      %s122 = scalar_select %p119, %s120, %s121
      %p125 = pneg %p119
      %p126 = scmp.eq.s32.totalorder %s21, 1
      %p127 = por %p125, %p126
      %p128 = scmp.ne.s32.totalorder %s120, %s123
      %p129 = scmp.eq.s32.totalorder %s21, 0
      %p130 = por %p128, %p129
      %p131 = scmp.ne.s32.totalorder %s120, %s123
      %p132 = scmp.eq.s32.totalorder %s26, 1
      %p133 = por %p131, %p132
      %p134 = scmp.ne.s32.totalorder %s123, %s124
      %p135 = scmp.eq.s32.totalorder %s26, 0
      %p136 = por %p134, %p135
      %p137 = scmp.ne.s32.totalorder %s123, %s124
      %p138 = scmp.eq.s32.totalorder %s27, 1
      %p139 = por %p137, %p138
      %p141 = scmp.ne.s32.totalorder %s124, %s140
      %p142 = scmp.eq.s32.totalorder %s27, 0
      %p143 = por %p141, %p142
      %p144 = scmp.le.s32.totalorder 1, %s21
      %p145 = scmp.lt.s32.totalorder %s21, 3
      %p146 = pnand %p144, %p145
      %p147 = pneg %p146
      // Predicated region
      $region9: #{tpu_custom_call.1} parent=5 // pred_check
        _
      $region10: #{tpu_custom_call.1} parent=5 // pred_check_branch
        %149 = sbr.rel (%p146) target = $region12
      $region11: #{tpu_custom_call.1} parent=5 // pred_region
        %s150 = ssub.s32 %s21, 1
        // Predicated region
        $region13: #{tpu_custom_call.1} parent=11 // pred_check
          %p151 = pneg %p54
        $region14: #{tpu_custom_call.1} parent=11 // pred_check_branch
          %153 = sbr.rel (%p151) target = $region16
        $region15: #{tpu_custom_call.1} parent=11 // pred_region
          _
        $region16: #{tpu_custom_call.1} parent=11 // pred_fallthru
          _
        // Predicated region
        $region17: #{tpu_custom_call.1} parent=11 // pred_check
          %p154 = pneg %p80
        $region18: #{tpu_custom_call.1} parent=11 // pred_check_branch
          %156 = sbr.rel (%p154) target = $region20
        $region19: #{tpu_custom_call.1} parent=11 // pred_region
          %p157 = scmp.lt.s32.totalorder %s31, 0
          %s158 = scalar_select %p157, %s31, 0
          %s159 = smul.addr %s158, 8
          %s160 = scalar_lea.vmem %s2, %s159
        $region20: #{tpu_custom_call.1} parent=11 // pred_fallthru
          _
      $region12: #{tpu_custom_call.1} parent=5 // pred_fallthru
        _
      %p161 = scmp.lt.s32.totalorder %s21, 2
      // Predicated region
      $region21: #{tpu_custom_call.1} parent=5 // pred_check
        %p162 = pneg %p161
      $region22: #{tpu_custom_call.1} parent=5 // pred_check_branch
        %164 = sbr.rel (%p162) target = $region24
      $region23: #{tpu_custom_call.1} parent=5 // pred_region
        // Predicated region
        $region25: #{tpu_custom_call.1} parent=23 // pred_check
          %p165 = pneg %p102
        $region26: #{tpu_custom_call.1} parent=23 // pred_check_branch
          %167 = sbr.rel (%p165) target = $region28
        $region27: #{tpu_custom_call.1} parent=23 // pred_region
          %p168 = scmp.lt.s32.totalorder %s28, 1
          %s169 = scalar_select %p168, %s28, 1
          %p170 = scmp.lt.s32.totalorder %s29, 0
          %s171 = scalar_select %p170, %s29, 0
          %s172 = sadd.s32 %s171, %s169
          %s173 = smul.addr %s172, 8
          %s174 = scalar_lea.vmem %s3, %s173
        $region28: #{tpu_custom_call.1} parent=23 // pred_fallthru
          _
      $region24: #{tpu_custom_call.1} parent=5 // pred_fallthru
        _
      %p175 = scmp.le.s32.totalorder 1, %s21
      %p176 = scmp.lt.s32.totalorder %s21, 3
      %p177 = pnand %p175, %p176
      %p178 = pneg %p177
      // Predicated region
      $region29: #{tpu_custom_call.1} parent=5 // pred_check
        _
      $region30: #{tpu_custom_call.1} parent=5 // pred_check_branch
        %180 = sbr.rel (%p177) target = $region32
      $region31: #{tpu_custom_call.1} parent=5 // pred_region
        %s181 = ssub.s32 %s21, 1
        %p182 = pneg %p54
        %p183 = pneg %p51
        %p184 = scmp.lt.s32.totalorder %s31, 0
        %s185 = scalar_select %p184, %s31, 0
        %s186 = smul.addr %s185, 8
        %s187 = scalar_lea.vmem %s2, %s186
        %p188 = pneg %p80
        %p189 = pneg %p77
        %p190 = scmp.lt.s32.totalorder %s30, 1
        %s191 = scalar_select %p190, %s30, 1
        %p192 = scmp.lt.s32.totalorder %s31, 0
        %s193 = scalar_select %p192, %s31, 0
        %s194 = sadd.s32 %s193, %s191
        %s195 = smul.addr %s194, 8
        %s196 = scalar_lea.vmem %s3, %s195
        %p197 = pneg %p108
        %p198 = pneg %p105
        %p199 = pneg %p136
        %p200 = pneg %p133
        %s201 = sand.u32 %s123, 1
        %s202 = scalar_lea.sflag [#allocation6], %s201
        %s203 = sand.u32 %s123, 1
        %s204 = smul.addr %s203, 8
        %s205 = scalar_lea.vmem [#allocation5], %s204
        %p206 = scmp.lt.s32.totalorder %s31, 0
        %s207 = scalar_select %p206, %s31, 0
        %s208 = smul.addr %s207, 8
        %s209 = scalar_lea.vmem %s2, %s208
        %p210 = scmp.lt.s32.totalorder %s30, 1
        %s211 = scalar_select %p210, %s30, 1
        %p212 = scmp.lt.s32.totalorder %s31, 0
        %s213 = scalar_select %p212, %s31, 0
        %s214 = sadd.s32 %s213, %s211
        %s215 = smul.addr %s214, 8
        %s216 = scalar_lea.vmem %s3, %s215
        %s217 = smul.u32 %s31, 8
        loop: start=0, step=1, limit=8
        $region33: #{tpu_custom_call.1} parent=31 // loop_pre_header
          _
        $region34: #{tpu_custom_call.1} parent=31 // loop_header
          %s219 = sphi 0, %s223
          %p220 = scmp.ge.s32.totalorder %s219, 8
        $region35: #{tpu_custom_call.1} parent=31 // loop_header_branch
          %222 = sbr.rel (%p220) target = $region39
        $region36: #{tpu_custom_call.1} parent=31 // loop_body
          %s224 = sadd.s32 %s217, %s219
          %s225 = sshra.s32 %s224, 7
          %s226 = sand.u32 %s224, 127
          %s227 = sadd.s32 %s225, %s30
          %s228 = smul.u32 %s227, 128
          %s229 = sshra.s32 %s224, 7
          %s230 = sand.u32 %s224, 127
          %s231 = sadd.s32 %s228, %s230
          %s232 = sld [smem:[#allocation4 + %s231]]
          %p233 = scmp.gt.s32.totalorder %s232, 0
          %s234 = scalar_select %p233, %s232, 0
          %p235 = scmp.lt.s32.totalorder %s234, 63
          %s236 = scalar_select %p235, %s234, 63
          %s237 = scalar_lea.vmem %s1, %s236
          %v238 = vld [vmem:[%s237] sm:$0x1]
          %s239 = scalar_lea.vmem [#allocation2], %s219
          %vm240 = vcmask 253952
          %241 = vst.msk [vmem:[%s239] sm:$0x1] %vm240, %v238
        $region37: #{tpu_custom_call.1} parent=31 // loop_footer
          %s223 = sadd.s32 1, %s219
        $region38: #{tpu_custom_call.1} parent=31 // loop_footer_branch
          %218 = sbr.rel target = $region34
        $region39: #{tpu_custom_call.1} parent=31 // loop_exit
          _
        %v242 = vld [vmem:[#allocation2] sm:$0xff]
        %v243 = vld [vmem:[%s209] sm:$0xff]
        %v244 = vadd.f32 %v242, %v243
        %v245 = vld [vmem:[%s216] sm:$0xff]
        %v246 = vadd.s32 %v245, 2147483648
        %vm248 = vcmp.ge.s32.totalorder %v246, 2576980378
        %v249 = vmul.f32 %v244, 1.1111112
        %v250 = vsel %vm248, %v249, 0.0
        %vm251 = vcmask 261120
        %252 = vst.msk [vmem:[%s205] sm:$0xff] %vm251, %v250
        %s253 = sand.u32 %s123, 1
        %s254 = scalar_lea.sflag [#allocation6], %s253
        %s255 = sand.u32 %s123, 1
        %s256 = smul.addr %s255, 8
        %s257 = scalar_lea.vmem [#allocation5], %s256
        // Predicated region
        $region40: #{tpu_custom_call.1} parent=31 // pred_check
          %p258 = pneg %p133
        $region41: #{tpu_custom_call.1} parent=31 // pred_check_branch
          %260 = sbr.rel (%p258) target = $region43
        $region42: #{tpu_custom_call.1} parent=31 // pred_region
          %262 = vsyncadd %s254, 0
          %s263 = sadd.s32 %s31, %s30
          %s264 = smul.addr %s263, 8
          %s265 = scalar_lea.hbm %s4, %s264
          %s267 = sshll.u32 %s257, 4
          %s268 = int_to_ptr.vmem [resolvable:$true] %s267
          %s269 = sshll.u32 %s265, 4
          %s270 = int_to_ptr.hbm [resolvable:$true] %s269
          %272 = dma.vmem_to_hbm [thread:$0]  %s268, 128, %s270, %s254
        $region43: #{tpu_custom_call.1} parent=31 // pred_fallthru
          _
      $region32: #{tpu_custom_call.1} parent=5 // pred_fallthru
        _
      %p273 = scmp.le.s32.totalorder 2, %s21
      // Predicated region
      $region44: #{tpu_custom_call.1} parent=5 // pred_check
        %p274 = pneg %p273
      $region45: #{tpu_custom_call.1} parent=5 // pred_check_branch
        %276 = sbr.rel (%p274) target = $region47
      $region46: #{tpu_custom_call.1} parent=5 // pred_region
        %s277 = ssub.s32 %s21, 2
        // Predicated region
        $region48: #{tpu_custom_call.1} parent=46 // pred_check
          %p278 = pneg %p139
        $region49: #{tpu_custom_call.1} parent=46 // pred_check_branch
          %280 = sbr.rel (%p278) target = $region51
        $region50: #{tpu_custom_call.1} parent=46 // pred_region
          %s281 = sand.u32 %s124, 1
          %s282 = scalar_lea.sflag [#allocation6], %s281
          %s283 = sand.u32 %s124, 1
          %s284 = smul.addr %s283, 8
          %s285 = scalar_lea.vmem [#allocation5], %s284
          %287 = dma.done %s282, 128
        $region51: #{tpu_custom_call.1} parent=46 // pred_fallthru
          _
      $region47: #{tpu_custom_call.1} parent=5 // pred_fallthru
        _
    $region6: #{tpu_custom_call.1} parent=1 // loop_footer
      %s25 = sadd.s32 1, %s21
    $region7: #{tpu_custom_call.1} parent=1 // loop_footer_branch
      %20 = sbr.rel target = $region3
    $region8: #{tpu_custom_call.1} parent=1 // loop_exit
      _
    %288 = vsyncpa [#allocation6], 1
    %s289 = scalar_lea.sflag [#allocation6], 1
    %290 = vsyncpa %s289, 1

</llo_original>
